<compile_context>
chip_gen: v7x
topology: tpu7x:2x2x1
jax: 0.10.0
libtpu: 0.0.40
codegen_flags: <defaults>
</compile_context>

<pallas_src>
import jax
import jax.numpy as jnp
from jax.experimental import pallas as pl
from jax.experimental.pallas import tpu as pltpu


def dueling_kernel(state_ref, fc1_ref, head_ref, out_ref):
    S = state_ref.shape[1]          # num_states
    H = fc1_ref.shape[1]            # fc1_size (64)
    A = out_ref.shape[1]            # num_actions

    # fc1 + ReLU  (MXU matmul, f32 accumulate).  fc1 slab = [w1 ; b1].
    w1 = fc1_ref[:S, :]             # (S, H)
    b1 = fc1_ref[S:S + 1, :]        # (1, H)
    x = jnp.dot(state_ref[...], w1, preferred_element_type=jnp.float32) + b1
    x = jnp.maximum(x, 0.0)

    # Fused head matmul: one (H, A+2) RHS = [wa | wv | mean_cols(wa)],
    # head slab = [W_head ; b_head].
    wh = head_ref[:H, :]            # (H, A+2)
    bh = head_ref[H:H + 1, :]       # (1, A+2)
    y = jnp.dot(x, wh, preferred_element_type=jnp.float32) + bh

    adv = y[:, :A]                  # (B, A)
    val = y[:, A:A + 1]             # (B, 1)
    row_adv_mean = y[:, A + 1:A + 2]            # per-row mean over actions
    adv_mean = jnp.mean(row_adv_mean)           # global mean over batch+actions

    # PyTorch: value + advantage - advantage.mean()   (global scalar mean)
    out_ref[...] = val + adv - adv_mean


def pack_params(w1, b1, wa, ba, wv, bv):
    """Pack the 6 Linear params into 2 VMEM-friendly slabs (done once)."""
    # fc1 slab: (S+1, H) = [w1 ; b1]
    fc1_pack = jnp.concatenate([w1, b1], axis=0)
    # fused head: columns = [advantage (A) | value (1) | mean_cols(advantage) (1)]
    wa_mean = jnp.mean(wa, axis=1, keepdims=True)   # (H, 1)
    ba_mean = jnp.mean(ba, axis=1, keepdims=True)   # (1, 1)
    w_head = jnp.concatenate([wa, wv, wa_mean], axis=1)   # (H, A+2)
    b_head = jnp.concatenate([ba, bv, ba_mean], axis=1)   # (1, A+2)
    head_pack = jnp.concatenate([w_head, b_head], axis=0)  # (H+1, A+2)
    return fc1_pack, head_pack


def dueling_forward(state, fc1_pack, head_pack, num_actions):
    B = state.shape[0]
    # Small problem: every operand fully VMEM-resident, no grid.
    vmem = pl.BlockSpec(memory_space=pltpu.MemorySpace.VMEM)
    return pl.pallas_call(
        dueling_kernel,
        out_shape=jax.ShapeDtypeStruct((B, num_actions), jnp.float32),
        in_specs=[vmem, vmem, vmem],
        out_specs=vmem,
    )(state, fc1_pack, head_pack)


def init_params(key, num_states, num_actions, fc1_size=64):
    """Deterministic PyTorch-style (Kaiming-uniform-ish) Linear init."""
    def linear(k, fan_in, fan_out):
        kw, kb = jax.random.split(k)
        bound = 1.0 / jnp.sqrt(fan_in)
        # stored as (in, out) so kernel does x @ W directly
        w = jax.random.uniform(kw, (fan_in, fan_out), jnp.float32, -bound, bound)
        b = jax.random.uniform(kb, (1, fan_out), jnp.float32, -bound, bound)
        return w, b

    k1, k2, k3 = jax.random.split(key, 3)
    w1, b1 = linear(k1, num_states, fc1_size)
    wa, ba = linear(k2, fc1_size, num_actions)
    wv, bv = linear(k3, fc1_size, 1)
    return w1, b1, wa, ba, wv, bv


def reference_forward(state, w1, b1, wa, ba, wv, bv):
    x = jnp.maximum(state @ w1 + b1, 0.0)
    adv = x @ wa + ba
    val = x @ wv + bv
    return val + adv - jnp.mean(adv)


if __name__ == "__main__":
    key = jax.random.PRNGKey(0)
    B, S, A = 8, 16, 8          # batch, num_states, num_actions

    k_state, k_params = jax.random.split(key)
    state = jax.random.normal(k_state, (B, S), jnp.float32)
    params = init_params(k_params, S, A)

    fc1_pack, head_pack = pack_params(*params)   # pack once, reuse every call

    out = dueling_forward(state, fc1_pack, head_pack, A)
    out = jax.block_until_ready(out)

    ref = reference_forward(state, *params)
    assert out.shape == (B, A)
    assert jnp.allclose(out, ref, atol=1e-5, rtol=1e-5)

    print("KERNEL_OK")
</pallas_src>

<mosaic_0001>
module attributes {stable_mosaic.version = 11 : i64} {
  func.func @dueling_kernel(%arg0: memref<8x16xf32, #tpu.memory_space<vmem>>, %arg1: memref<17x64xf32, #tpu.memory_space<vmem>>, %arg2: memref<65x10xf32, #tpu.memory_space<vmem>>, %arg3: memref<8x8xf32, #tpu.memory_space<vmem>>) attributes {dimension_semantics = [], scalar_prefetch = 0 : i64, scratch_operands = 0 : i64, tpu.core_type = #tpu.core_type<tc>} {
    %c0 = arith.constant 0 : index
    %c0_0 = arith.constant 0 : index
    %0 = vector.load %arg1[%c0, %c0_0] : memref<17x64xf32, #tpu.memory_space<vmem>>, vector<16x64xf32>
    %c16 = arith.constant 16 : index
    %c0_1 = arith.constant 0 : index
    %1 = vector.load %arg1[%c16, %c0_1] : memref<17x64xf32, #tpu.memory_space<vmem>>, vector<1x64xf32>
    %c0_2 = arith.constant 0 : index
    %c0_3 = arith.constant 0 : index
    %2 = vector.load %arg0[%c0_2, %c0_3] : memref<8x16xf32, #tpu.memory_space<vmem>>, vector<8x16xf32>
    %cst = arith.constant dense<0.000000e+00> : vector<8x64xf32>
    %3 = tpu.matmul %2, %0, %cst {dimension_numbers = #tpu.dot_dimension_numbers<[1], [0], [0], [1], [0, 0, 1, 1], [], []>} : vector<8x16xf32>, vector<16x64xf32>, vector<8x64xf32> -> vector<8x64xf32>
    %4 = vector.broadcast %1 : vector<1x64xf32> to vector<8x64xf32>
    %5 = arith.addf %3, %4 : vector<8x64xf32>
    %cst_4 = arith.constant 0.000000e+00 : f32
    %6 = vector.broadcast %cst_4 : f32 to vector<8x64xf32>
    %7 = arith.maximumf %5, %6 : vector<8x64xf32>
    %c0_5 = arith.constant 0 : index
    %c0_6 = arith.constant 0 : index
    %8 = vector.load %arg2[%c0_5, %c0_6] : memref<65x10xf32, #tpu.memory_space<vmem>>, vector<64x10xf32>
    %c64 = arith.constant 64 : index
    %c0_7 = arith.constant 0 : index
    %9 = vector.load %arg2[%c64, %c0_7] : memref<65x10xf32, #tpu.memory_space<vmem>>, vector<1x10xf32>
    %cst_8 = arith.constant dense<0.000000e+00> : vector<8x10xf32>
    %10 = tpu.matmul %7, %8, %cst_8 {dimension_numbers = #tpu.dot_dimension_numbers<[1], [0], [0], [1], [0, 0, 1, 1], [], []>} : vector<8x64xf32>, vector<64x10xf32>, vector<8x10xf32> -> vector<8x10xf32>
    %11 = vector.broadcast %9 : vector<1x10xf32> to vector<8x10xf32>
    %12 = arith.addf %10, %11 : vector<8x10xf32>
    %13 = vector.extract_strided_slice %12 {offsets = [0, 0], sizes = [8, 8], strides = [1, 1]} : vector<8x10xf32> to vector<8x8xf32>
    %14 = vector.extract_strided_slice %12 {offsets = [0, 8], sizes = [8, 1], strides = [1, 1]} : vector<8x10xf32> to vector<8x1xf32>
    %15 = vector.extract_strided_slice %12 {offsets = [0, 9], sizes = [8, 1], strides = [1, 1]} : vector<8x10xf32> to vector<8x1xf32>
    %16 = vector.shape_cast %15 : vector<8x1xf32> to vector<1x8x1xf32>
    %cst_9 = arith.constant dense<0.000000e+00> : vector<1xf32>
    %17 = vector.multi_reduction <add>, %16, %cst_9 [1, 2] : vector<1x8x1xf32> to vector<1xf32>
    %18 = vector.shape_cast %17 : vector<1xf32> to vector<1x1x1xf32>
    %19 = vector.extract %18[0, 0, 0] : f32 from vector<1x1x1xf32>
    %cst_10 = arith.constant 8.000000e+00 : f32
    %20 = arith.divf %19, %cst_10 : f32
    %21 = vector.broadcast %14 : vector<8x1xf32> to vector<8x8xf32>
    %22 = arith.addf %21, %13 : vector<8x8xf32>
    %23 = vector.broadcast %20 : f32 to vector<8x8xf32>
    %24 = arith.subf %22, %23 : vector<8x8xf32>
    %c0_11 = arith.constant 0 : index
    %c0_12 = arith.constant 0 : index
    %25 = vector.load %arg3[%c0_11, %c0_12] : memref<8x8xf32, #tpu.memory_space<vmem>>, vector<8x8xf32>
    tpu.vector_store %arg3[%c0_11, %c0_12], %24 {strides = array<i32>} : memref<8x8xf32, #tpu.memory_space<vmem>>, vector<8x8xf32>,
    return
  }
}

</mosaic_0001>

<llo_original>
// kernel: tpu_custom_call.1
$region0: #{tpu_custom_call.1}
  #allocation0 [shape = 'u32[]', space=smem, size = 0x4, offset = 0x4, fixed_abs, tag = 'smem constant byte address 0x4 - core index']
  #allocation1 [shape = 'u32[144,128]{1,0:T(1,128)}', space=vmem, size = 0x12000, scoped, tag = 'internal scratch']
  %s0 = inlined_call_operand.vmem [shape: f32[8,16], index: 0, kind: input, shape index: {}]
  %s1 = inlined_call_operand.vmem [shape: f32[17,64], index: 1, kind: input, shape index: {}]
  %s2 = inlined_call_operand.vmem [shape: f32[65,10], index: 2, kind: input, shape index: {}]
  %s3 = inlined_call_operand.hbm [shape: f32[8,8], index: 3, kind: output, shape index: {}]
  %s4 = sld [smem:[#allocation0]]
  $region22: #{tpu_custom_call.1} parent=0
    _
  %s6 = ssub.s32 1, %s4
  %s7 = scalar_select 0, %s6, %s4
  $region1: #{tpu_custom_call.1} parent=0
    #allocation2 [shape = 'u8[4096]{0}', space=vmem, size = 0x1000, scoped, tag = 'output window, operand 0, single buffered']
    #allocation3 [shape = 's32[1]{0}', space=sflag, size = 0x4, scoped, tag = 'scoped memory for tpu_custom_call.1']
    %8 = vsyncpa [#allocation3], 0
    // Predicated region
    $region2: #{tpu_custom_call.1} parent=1 // pred_check
      _
    $region3: #{tpu_custom_call.1} parent=1 // pred_check_branch
      %10 = sbr.rel (0) target = $region5
    $region4: #{tpu_custom_call.1} parent=1 // pred_region
      _
    $region5: #{tpu_custom_call.1} parent=1 // pred_fallthru
      _
    // Predicated region
    $region6: #{tpu_custom_call.1} parent=1 // pred_check
      _
    $region7: #{tpu_custom_call.1} parent=1 // pred_check_branch
      %12 = sbr.rel (0) target = $region9
    $region8: #{tpu_custom_call.1} parent=1 // pred_region
      _
    $region9: #{tpu_custom_call.1} parent=1 // pred_fallthru
      _
    // Predicated region
    $region10: #{tpu_custom_call.1} parent=1 // pred_check
      _
    $region11: #{tpu_custom_call.1} parent=1 // pred_check_branch
      %14 = sbr.rel (0) target = $region13
    $region12: #{tpu_custom_call.1} parent=1 // pred_region
      _
    $region13: #{tpu_custom_call.1} parent=1 // pred_fallthru
      _
    %v15 = vld [vmem:[%s1] sm:$0xff]
    %v16 = vld [vmem:[%s1 + $0x8] sm:$0xff]
    %v17 = vld [vmem:[%s1 + $0x10] sm:$0x1]
    %v18 = vld [vmem:[%s0] sm:$0xff]
    %v19 = vlaneseq
    %v20 = vshrl.u32 %v19, 7
    %v21 = vsub.s32 0, %v20
    %v22 = vrot.slane %v17, %v21
    %vm23 = vcmask 130048
    %v25 = vsel %vm23, %v18, 0
    %27 = vmatprep.subr.mxu0 0.0
    %28 = vmatpush1.msra.mxu0 %v15
    %29 = vmatprep.subr.mxu0 0.0
    %30 = vmatpush1.msra.mxu0 %v16
    %31 = vmatprep.subr.mxu0 0.0
    %32 = vmatpush1.msra.mxu0 0.0
    %33 = vmatprep.subr.mxu0 0.0
    %34 = vmatpush1.msra.mxu0 0.0
    %35 = vmatprep.subr.mxu0 0.0
    %36 = vmatpush1.msra.mxu0 0.0
    %37 = vmatprep.subr.mxu0 0.0
    %38 = vmatpush1.msra.mxu0 0.0
    %39 = vmatprep.subr.mxu0 0.0
    %40 = vmatpush1.msra.mxu0 0.0
    %41 = vmatprep.subr.mxu0 0.0
    %42 = vmatpush1.msra.mxu0 0.0
    %43 = vmatprep.subr.mxu0 0.0
    %44 = vmatpush1.msra.mxu0 0.0
    %45 = vmatprep.subr.mxu0 0.0
    %46 = vmatpush1.msra.mxu0 0.0
    %47 = vmatprep.subr.mxu0 0.0
    %48 = vmatpush1.msra.mxu0 0.0
    %49 = vmatprep.subr.mxu0 0.0
    %50 = vmatpush1.msra.mxu0 0.0
    %51 = vmatprep.subr.mxu0 0.0
    %52 = vmatpush1.msra.mxu0 0.0
    %53 = vmatprep.subr.mxu0 0.0
    %54 = vmatpush1.msra.mxu0 0.0
    %55 = vmatprep.subr.mxu0 0.0
    %56 = vmatpush1.msra.mxu0 0.0
    %57 = vmatprep.subr.mxu0 0.0
    %58 = vmatpush1.msra.mxu0 0.0
    %59 = vmatprep.subr.mxu0 0.0
    %60 = vmatpush1.msra.mxu0 0.0
    %61 = vmatprep.subr.mxu0 0.0
    %62 = vmatpush1.msra.mxu0 0.0
    %63 = vmatprep.subr.mxu0 0.0
    %64 = vmatpush1.msra.mxu0 0.0
    %65 = vmatprep.subr.mxu0 0.0
    %66 = vmatpush1.msra.mxu0 0.0
    %67 = vmatprep.subr.mxu0 0.0
    %68 = vmatpush1.msra.mxu0 0.0
    %69 = vmatprep.subr.mxu0 0.0
    %70 = vmatpush1.msra.mxu0 0.0
    %71 = vmatprep.subr.mxu0 0.0
    %72 = vmatpush1.msra.mxu0 0.0
    %73 = vmatprep.subr.mxu0 0.0
    %74 = vmatpush1.msra.mxu0 0.0
    %75 = vmatprep.subr.mxu0 0.0
    %76 = vmatpush1.msra.mxu0 0.0
    %77 = vmatprep.subr.mxu0 0.0
    %78 = vmatpush1.msra.mxu0 0.0
    %79 = vmatprep.subr.mxu0 0.0
    %80 = vmatpush1.msra.mxu0 0.0
    %81 = vmatprep.subr.mxu0 0.0
    %82 = vmatpush1.msra.mxu0 0.0
    %83 = vmatprep.subr.mxu0 0.0
    %84 = vmatpush1.msra.mxu0 0.0
    %85 = vmatprep.subr.mxu0 0.0
    %86 = vmatpush1.msra.mxu0 0.0
    %87 = vmatprep.subr.mxu0 0.0
    %88 = vmatpush1.msra.mxu0 0.0
    %89 = vmatprep.subr.mxu0 0.0
    %90 = vmatpush1.msra.mxu0 0.0
    %91 = vmatprep.mubr.f32.mxu0 0.0
    %92 = vmatmul.mubr.f32.gmra.mrb[0].mxu0 %v25
    %v93 = vpop.f32.mrb[0].mxu0
    %v94 = vadd.f32 %v22, %v93
    %v95 = vpop.f32.mrb[0].mxu0
    %96 = vdwg.mxu0
    %v97 = vmax.f32 %v94, 0.0
    %v98 = vld [vmem:[%s2] sm:$0xff]
    %v99 = vld [vmem:[%s2 + $0x8] sm:$0xff]
    %v100 = vld [vmem:[%s2 + $0x10] sm:$0xff]
    %v101 = vld [vmem:[%s2 + $0x18] sm:$0xff]
    %v102 = vld [vmem:[%s2 + $0x20] sm:$0xff]
    %v103 = vld [vmem:[%s2 + $0x28] sm:$0xff]
    %v104 = vld [vmem:[%s2 + $0x30] sm:$0xff]
    %v105 = vld [vmem:[%s2 + $0x38] sm:$0xff]
    %v106 = vld [vmem:[%s2 + $0x40] sm:$0x1]
    %v107 = vlaneseq
    %v108 = vshrl.u32 %v107, 7
    %v109 = vsub.s32 0, %v108
    %v110 = vrot.slane %v106, %v109
    %vm111 = vcmask 523264
    %v113 = vsel %vm111, %v97, 0
    %115 = vmatprep.subr.mxu0 0.0
    %116 = vmatpush1.msra.mxu0 %v98
    %117 = vmatprep.subr.mxu0 0.0
    %118 = vmatpush1.msra.mxu0 %v99
    %119 = vmatprep.subr.mxu0 0.0
    %120 = vmatpush1.msra.mxu0 %v100
    %121 = vmatprep.subr.mxu0 0.0
    %122 = vmatpush1.msra.mxu0 %v101
    %123 = vmatprep.subr.mxu0 0.0
    %124 = vmatpush1.msra.mxu0 %v102
    %125 = vmatprep.subr.mxu0 0.0
    %126 = vmatpush1.msra.mxu0 %v103
    %127 = vmatprep.subr.mxu0 0.0
    %128 = vmatpush1.msra.mxu0 %v104
    %129 = vmatprep.subr.mxu0 0.0
    %130 = vmatpush1.msra.mxu0 %v105
    %131 = vmatprep.subr.mxu0 0.0
    %132 = vmatpush1.msra.mxu0 0.0
    %133 = vmatprep.subr.mxu0 0.0
    %134 = vmatpush1.msra.mxu0 0.0
    %135 = vmatprep.subr.mxu0 0.0
    %136 = vmatpush1.msra.mxu0 0.0
    %137 = vmatprep.subr.mxu0 0.0
    %138 = vmatpush1.msra.mxu0 0.0
    %139 = vmatprep.subr.mxu0 0.0
    %140 = vmatpush1.msra.mxu0 0.0
    %141 = vmatprep.subr.mxu0 0.0
    %142 = vmatpush1.msra.mxu0 0.0
    %143 = vmatprep.subr.mxu0 0.0
    %144 = vmatpush1.msra.mxu0 0.0
    %145 = vmatprep.subr.mxu0 0.0
    %146 = vmatpush1.msra.mxu0 0.0
    %147 = vmatprep.subr.mxu0 0.0
    %148 = vmatpush1.msra.mxu0 0.0
    %149 = vmatprep.subr.mxu0 0.0
    %150 = vmatpush1.msra.mxu0 0.0
    %151 = vmatprep.subr.mxu0 0.0
    %152 = vmatpush1.msra.mxu0 0.0
    %153 = vmatprep.subr.mxu0 0.0
    %154 = vmatpush1.msra.mxu0 0.0
    %155 = vmatprep.subr.mxu0 0.0
    %156 = vmatpush1.msra.mxu0 0.0
    %157 = vmatprep.subr.mxu0 0.0
    %158 = vmatpush1.msra.mxu0 0.0
    %159 = vmatprep.subr.mxu0 0.0
    %160 = vmatpush1.msra.mxu0 0.0
    %161 = vmatprep.subr.mxu0 0.0
    %162 = vmatpush1.msra.mxu0 0.0
    %163 = vmatprep.subr.mxu0 0.0
    %164 = vmatpush1.msra.mxu0 0.0
    %165 = vmatprep.subr.mxu0 0.0
    %166 = vmatpush1.msra.mxu0 0.0
    %167 = vmatprep.subr.mxu0 0.0
    %168 = vmatpush1.msra.mxu0 0.0
    %169 = vmatprep.subr.mxu0 0.0
    %170 = vmatpush1.msra.mxu0 0.0
    %171 = vmatprep.subr.mxu0 0.0
    %172 = vmatpush1.msra.mxu0 0.0
    %173 = vmatprep.subr.mxu0 0.0
    %174 = vmatpush1.msra.mxu0 0.0
    %175 = vmatprep.subr.mxu0 0.0
    %176 = vmatpush1.msra.mxu0 0.0
    %177 = vmatprep.subr.mxu0 0.0
    %178 = vmatpush1.msra.mxu0 0.0
    %179 = vmatprep.mubr.f32.mxu0 0.0
    %180 = vmatmul.mubr.f32.gmra.mrb[0].mxu0 %v113
    %v181 = vpop.f32.mrb[0].mxu0
    %v182 = vadd.f32 %v110, %v181
    %v183 = vpop.f32.mrb[0].mxu0
    %184 = vdwg.mxu0
    %186 = vrot.lane.b32.xlu0 %v182, 119
    %v187 = vpop.permute.xlu0 %186
    %vm189 = vcmask 7168
    %v190 = vsel %vm189, %v187, 0.0
    %191 = vadd.xlane.f32.xlu0 %v190
    %v192 = vpop.xlane.xlu0 %191
    %v193 = vrot.slane %v192, 4
    %v194 = vadd.f32 %v192, %v193
    %v195 = vrot.slane %v194, 2
    %v196 = vadd.f32 %v194, %v195
    %v197 = vrot.slane %v196, 1
    %v198 = vadd.f32 %v196, %v197
    %s199 = vtos %v198
    %v200 = vrcp.pop 8.0
    %s201 = vtos %v200
    %s202 = smul.f32 %s199, %s201
    %203 = vset.pattern.permute.xlu0 8
    %204 = vperm.xlu0 %203, %v182
    %v205 = vpop.permute.xlu0 %204
    %v207 = vadd.f32 %v205, %v182
    %v208 = vstv %s202
    %v209 = vsub.f32 %v207, %v208
    %vm210 = vcmask 64512
    %211 = vst.msk [vmem:[#allocation2] sm:$0xff] %vm210, %v209
    // Predicated region
    $region14: #{tpu_custom_call.1} parent=1 // pred_check
      _
    $region15: #{tpu_custom_call.1} parent=1 // pred_check_branch
      %213 = sbr.rel (0) target = $region17
    $region16: #{tpu_custom_call.1} parent=1 // pred_region
      %s215 = ssub.s32 128, 128
      %216 = vsyncadd [#allocation3], %s215
      %s218 = sshll.u32 [#allocation2], 4
      %s219 = int_to_ptr.vmem [resolvable:$true] %s218
      %221 = dma.vmem_to_hbm [thread:$0]  %s219, 128, %s3, [#allocation3]
    $region17: #{tpu_custom_call.1} parent=1 // pred_fallthru
      _
    // Predicated region
    $region18: #{tpu_custom_call.1} parent=1 // pred_check
      _
    $region19: #{tpu_custom_call.1} parent=1 // pred_check_branch
      %223 = sbr.rel (0) target = $region21
    $region20: #{tpu_custom_call.1} parent=1 // pred_region
      %224 = dma.done [#allocation3], 128
    $region21: #{tpu_custom_call.1} parent=1 // pred_fallthru
      _
    %225 = vsyncpa [#allocation3], 1

</llo_original>
